<compile_context>
chip_gen: v7x
topology: tpu7x:2x2x1
jax: 0.10.0
libtpu: 0.0.40
codegen_flags: <defaults>
</compile_context>

<pallas_src>
import jax
import jax.numpy as jnp
from jax.experimental import pallas as pl
from jax.experimental.pallas import tpu as pltpu


def snake_beta_kernel(x_ref, alpha_ref, gamma_ref, o_ref):
    # x_ref:     (1, cC, tT)  activation tile in VMEM
    # alpha_ref: (1, cC, 1)   per-channel frequency (broadcasts over T)
    # gamma_ref: (1, cC, 1)   per-channel 1/(beta + 1e-9), precomputed
    x = x_ref[...]
    a = alpha_ref[...]
    g = gamma_ref[...]
    s = jnp.sin(x * a)
    o_ref[...] = x + g * (s * s)


def _pick_tiles(C, T, itemsize, block_budget_bytes=2 * 1024 * 1024):
    """Pick (cC, tT): lane-dense, multiples of (8, 128), block <= ~2 MiB."""
    # Lane (last-dim) tile: prefer a multiple-of-128 divisor of T, biggest first.
    if T <= 2048:
        tT = T  # full axis as the block dim is always legal
    else:
        tT = 2048  # ragged tail handled by Pallas masking
        for cand in (2048, 1536, 1024, 768, 512, 384, 256, 128):
            if T % cand == 0:
                tT = cand
                break

    # Sublane tile: multiple of 8, biggest that keeps the x/out block in budget.
    max_c = max(8, block_budget_bytes // max(1, tT * itemsize))
    if C <= max_c:
        cC = C  # full channel axis (legal even if not a multiple of 8)
    else:
        cC = max(8, min((max_c // 8) * 8, 512))
        # Prefer a divisor of C to avoid ragged sublane tails when cheap to do.
        for cand in range(cC, 7, -8):
            if C % cand == 0:
                cC = cand
                break
    return cC, tT


def snake_beta(x, alpha, beta, *, alpha_logscale=False):
    """x: (B, C, T); alpha, beta: (C,).  Returns x + 1/(beta+1e-9)*sin(alpha*x)^2."""
    B, C, T = x.shape

    # Parameter prep runs once in XLA on C elements, not per tile.
    if alpha_logscale:
        alpha = jnp.exp(alpha)
        beta = jnp.exp(beta)
    gamma = 1.0 / (beta.astype(jnp.float32) + 1e-9)  # exact reciprocal, hoisted

    alpha3 = alpha.reshape(1, C, 1).astype(x.dtype)
    gamma3 = gamma.reshape(1, C, 1).astype(x.dtype)

    cC, tT = _pick_tiles(C, T, jnp.dtype(x.dtype).itemsize)
    grid = (B, pl.cdiv(C, cC), pl.cdiv(T, tT))

    return pl.pallas_call(
        snake_beta_kernel,
        out_shape=jax.ShapeDtypeStruct((B, C, T), x.dtype),
        grid_spec=pltpu.PrefetchScalarGridSpec(
            num_scalar_prefetch=0,
            grid=grid,
            in_specs=[
                pl.BlockSpec((1, cC, tT), lambda b, c, t: (b, c, t)),
                pl.BlockSpec((1, cC, 1), lambda b, c, t: (0, c, 0)),
                pl.BlockSpec((1, cC, 1), lambda b, c, t: (0, c, 0)),
            ],
            out_specs=pl.BlockSpec((1, cC, tT), lambda b, c, t: (b, c, t)),
        ),
        compiler_params=pltpu.CompilerParams(
            # All grid axes are independent -> shardable across v7x's 2 TCs.
            dimension_semantics=("parallel", "parallel", "parallel"),
            # <=2 MiB blocks, double-buffered in+out ~8 MiB; keep headroom.
            vmem_limit_bytes=32 * 1024 * 1024,
        ),
    )(x, alpha3, gamma3)


def _reference(x, alpha, beta, *, alpha_logscale=False):
    # Same math as the PyTorch forward.
    if alpha_logscale:
        alpha = jnp.exp(alpha)
        beta = jnp.exp(beta)
    return x + (1.0 / (beta[None, :, None] + 1e-9)) * jnp.sin(
        x * alpha[None, :, None]
    ) ** 2


if __name__ == "__main__":
    key = jax.random.PRNGKey(0)

    # --- Small demo shape (matches the module's (B, C, T) layout) ---
    B, C, T = 2, 4, 16
    # SnakeBeta.__init__ with alpha_logscale=False: alpha = beta = ones(C).
    alpha = jnp.ones((C,), dtype=jnp.float32)
    beta = jnp.ones((C,), dtype=jnp.float32)

    k0, k1, k2, k3 = jax.random.split(key, 4)
    x = jax.random.normal(k0, (B, C, T), dtype=jnp.float32)

    out = jax.block_until_ready(snake_beta(x, alpha, beta))
    ref = _reference(x, alpha, beta)
    assert out.shape == (B, C, T)
    assert jnp.allclose(out, ref, atol=1e-5, rtol=1e-5)

    # --- Secondary check exercising the T-tiled / ragged-tail path ---
    B2, C2, T2 = 1, 8, 3000  # T2 > 2048 and not a multiple of 128
    alpha2 = 1.0 + 0.1 * jax.random.normal(k1, (C2,), dtype=jnp.float32)
    beta2 = 1.0 + 0.1 * jax.random.normal(k2, (C2,), dtype=jnp.float32)
    x2 = jax.random.normal(k3, (B2, C2, T2), dtype=jnp.float32)

    out2 = jax.block_until_ready(snake_beta(x2, alpha2, beta2))
    ref2 = _reference(x2, alpha2, beta2)
    assert out2.shape == (B2, C2, T2)
    assert jnp.allclose(out2, ref2, atol=1e-5, rtol=1e-5)

    # --- Third check: alpha_logscale=True path ---
    out3 = jax.block_until_ready(
        snake_beta(x2, 0.1 * alpha2, 0.1 * beta2, alpha_logscale=True)
    )
    ref3 = _reference(x2, 0.1 * alpha2, 0.1 * beta2, alpha_logscale=True)
    assert jnp.allclose(out3, ref3, atol=1e-5, rtol=1e-5)

    print("KERNEL_OK")
</pallas_src>

<mosaic_0001>
module attributes {stable_mosaic.version = 11 : i64} {
  func.func @snake_beta_kernel(%arg0: i32, %arg1: i32, %arg2: i32, %arg3: memref<1x4x16xf32, #tpu.memory_space<vmem>>, %arg4: memref<1x4x1xf32, #tpu.memory_space<vmem>>, %arg5: memref<1x4x1xf32, #tpu.memory_space<vmem>>, %arg6: memref<1x4x16xf32, #tpu.memory_space<vmem>>) attributes {dimension_semantics = [#tpu.dimension_semantics<parallel>, #tpu.dimension_semantics<parallel>, #tpu.dimension_semantics<parallel>], iteration_bounds = array<i64: 2, 1, 1>, scalar_prefetch = 0 : i64, scratch_operands = 0 : i64, tpu.core_type = #tpu.core_type<tc>, window_params = [{transform_indices = @transform_0, window_bounds = array<i64: 1, 4, 16>}, {transform_indices = @transform_1, window_bounds = array<i64: 1, 4, 1>}, {transform_indices = @transform_2, window_bounds = array<i64: 1, 4, 1>}, {transform_indices = @transform_3, window_bounds = array<i64: 1, 4, 16>}]} {
    %c0 = arith.constant 0 : index
    %c0_0 = arith.constant 0 : index
    %c0_1 = arith.constant 0 : index
    %0 = vector.load %arg3[%c0, %c0_0, %c0_1] : memref<1x4x16xf32, #tpu.memory_space<vmem>>, vector<1x4x16xf32>
    %c0_2 = arith.constant 0 : index
    %c0_3 = arith.constant 0 : index
    %c0_4 = arith.constant 0 : index
    %1 = vector.load %arg4[%c0_2, %c0_3, %c0_4] : memref<1x4x1xf32, #tpu.memory_space<vmem>>, vector<1x4x1xf32>
    %c0_5 = arith.constant 0 : index
    %c0_6 = arith.constant 0 : index
    %c0_7 = arith.constant 0 : index
    %2 = vector.load %arg5[%c0_5, %c0_6, %c0_7] : memref<1x4x1xf32, #tpu.memory_space<vmem>>, vector<1x4x1xf32>
    %3 = vector.broadcast %1 : vector<1x4x1xf32> to vector<1x4x16xf32>
    %4 = arith.mulf %0, %3 : vector<1x4x16xf32>
    %5 = math.sin %4 : vector<1x4x16xf32>
    %6 = arith.mulf %5, %5 : vector<1x4x16xf32>
    %7 = vector.broadcast %2 : vector<1x4x1xf32> to vector<1x4x16xf32>
    %8 = arith.mulf %7, %6 : vector<1x4x16xf32>
    %9 = arith.addf %0, %8 : vector<1x4x16xf32>
    %c0_8 = arith.constant 0 : index
    %c0_9 = arith.constant 0 : index
    %c0_10 = arith.constant 0 : index
    %10 = vector.load %arg6[%c0_8, %c0_9, %c0_10] : memref<1x4x16xf32, #tpu.memory_space<vmem>>, vector<1x4x16xf32>
    tpu.vector_store %arg6[%c0_8, %c0_9, %c0_10], %9 {strides = array<i32>} : memref<1x4x16xf32, #tpu.memory_space<vmem>>, vector<1x4x16xf32>,
    return
  }
  func.func @transform_0(%arg0: i32, %arg1: i32, %arg2: i32) -> (i32, i32, i32) {
    %c0_i32 = arith.constant 0 : i32
    return %arg0, %arg1, %arg2 : i32, i32, i32
  }
  func.func @transform_1(%arg0: i32, %arg1: i32, %arg2: i32) -> (i32, i32, i32) {
    %c0_i32 = arith.constant 0 : i32
    %c0_i32_0 = arith.constant 0 : i32
    %c0_i32_1 = arith.constant 0 : i32
    return %c0_i32, %arg1, %c0_i32_0 : i32, i32, i32
  }
  func.func @transform_2(%arg0: i32, %arg1: i32, %arg2: i32) -> (i32, i32, i32) {
    %c0_i32 = arith.constant 0 : i32
    %c0_i32_0 = arith.constant 0 : i32
    %c0_i32_1 = arith.constant 0 : i32
    return %c0_i32, %arg1, %c0_i32_0 : i32, i32, i32
  }
  func.func @transform_3(%arg0: i32, %arg1: i32, %arg2: i32) -> (i32, i32, i32) {
    %c0_i32 = arith.constant 0 : i32
    return %arg0, %arg1, %arg2 : i32, i32, i32
  }
}

</mosaic_0001>

<llo_original>
// kernel: tpu_custom_call.1
$region0: #{tpu_custom_call.1}
  #allocation0 [shape = 'u32[]', space=smem, size = 0x4, offset = 0x4, fixed_abs, tag = 'smem constant byte address 0x4 - core index']
  #allocation1 [shape = 'u32[144,128]{1,0:T(1,128)}', space=vmem, size = 0x12000, scoped, tag = 'internal scratch']
  %s0 = inlined_call_operand.vmem [shape: f32[2,4,16], index: 0, kind: input, shape index: {}]
  %s1 = inlined_call_operand.vmem [shape: f32[1,4,1], index: 1, kind: input, shape index: {}]
  %s2 = inlined_call_operand.vmem [shape: f32[1,4,1], index: 2, kind: input, shape index: {}]
  %s3 = inlined_call_operand.hbm [shape: f32[2,4,16], index: 3, kind: output, shape index: {}]
  %s4 = sld [smem:[#allocation0]]
  $region45: #{tpu_custom_call.1} parent=0
    _
  %s6 = ssub.s32 1, %s4
  %s7 = scalar_select 0, %s6, %s4
  $region1: #{tpu_custom_call.1} parent=0
    #allocation2 [shape = 'u8[4096]{0}', space=vmem, size = 0x1000, scoped, tag = 'output window, operand 0']
    #allocation3 [shape = 's32[2]{0}', space=sflag, size = 0x8, scoped, tag = 'scoped memory for tpu_custom_call.1']
    %8 = vsyncpa [#allocation3], 0
    %s9 = scalar_lea.sflag [#allocation3], 1
    %10 = vsyncpa %s9, 0
    loop: start=0, step=1, limit=4
    $region2: #{tpu_custom_call.1} parent=1 // loop_pre_header
      _
    $region3: #{tpu_custom_call.1} parent=1 // loop_header
      %s12 = sphi 0, %s16
      %p13 = scmp.ge.s32.totalorder %s12, 4
      %s19 = sphi 0, %s38
      %s20 = sphi 0, %s34
      %s21 = sphi 0, %s30
      %s22 = sphi 0, %s19
      %s23 = sphi 0, %s20
      %s24 = sphi 0, %s21
      %s25 = sphi 0, %s22
      %s26 = sphi 0, %s23
      %s27 = sphi 0, %s24
      %s45 = sphi 0, %s47
      %s48 = sphi 0, %s45
      %s49 = sphi 0, %s48
      %s65 = sphi 0, %s49
      %s71 = sphi 0, %s73
      %s74 = sphi 0, %s71
      %s75 = sphi 0, %s74
      %s91 = sphi 0, %s75
      %s97 = sphi 0, %s99
      %s100 = sphi 0, %s97
      %s101 = sphi 0, %s100
      %s117 = sphi 0, %s101
      %s127 = sphi 0, %s129
      %s130 = sphi 0, %s127
      %s131 = sphi 0, %s130
      %s147 = sphi 0, %s131
    $region4: #{tpu_custom_call.1} parent=1 // loop_header_branch
      %15 = sbr.rel (%p13) target = $region8
    $region5: #{tpu_custom_call.1} parent=1 // loop_body
      %s17 = ssub.s32 %s12, 1
      %s18 = ssub.s32 %s12, 2
      %s28 = sadd.s32 1, %s21
      %p29 = scmp.ge.s32.totalorder %s28, 1
      %s30 = scalar_select %p29, 0, %s28
      %s31 = sadd.s32 1, %s20
      %s32 = scalar_select %p29, %s31, %s20
      %p33 = scmp.ge.s32.totalorder %s32, 1
      %s34 = scalar_select %p33, 0, %s32
      %s35 = sadd.s32 1, %s19
      %s36 = scalar_select %p33, %s35, %s19
      %p37 = scmp.ge.s32.totalorder %s36, 2
      %s38 = scalar_select %p37, 0, %s36
      %s39 = ssub.s32 %s19, %s38
      %s40 = ssub.s32 %s20, %s34
      %s41 = sor.u32 %s39, %s40
      %s42 = ssub.s32 %s21, %s30
      %s43 = sor.u32 %s41, %s42
      %p44 = scmp.eq.s32.totalorder %s43, 0
      %s46 = sadd.s32 %s45, 1
      %s47 = scalar_select %p44, %s45, %s46
      %p50 = pneg %p44
      %p51 = scmp.eq.s32.totalorder %s12, 1
      %p52 = por %p50, %p51
      %p53 = scmp.ne.s32.totalorder %s45, %s48
      %p54 = scmp.eq.s32.totalorder %s12, 0
      %p55 = por %p53, %p54
      %p56 = scmp.ne.s32.totalorder %s45, %s48
      %p57 = scmp.eq.s32.totalorder %s17, 1
      %p58 = por %p56, %p57
      %p59 = scmp.ne.s32.totalorder %s48, %s49
      %p60 = scmp.eq.s32.totalorder %s17, 0
      %p61 = por %p59, %p60
      %p62 = scmp.ne.s32.totalorder %s48, %s49
      %p63 = scmp.eq.s32.totalorder %s18, 1
      %p64 = por %p62, %p63
      %p66 = scmp.ne.s32.totalorder %s49, %s65
      %p67 = scmp.eq.s32.totalorder %s18, 0
      %p68 = por %p66, %p67
      %s69 = ssub.s32 %s20, %s34
      %p70 = scmp.eq.s32.totalorder %s69, 0
      %s72 = sadd.s32 %s71, 1
      %s73 = scalar_select %p70, %s71, %s72
      %p76 = pneg %p70
      %p77 = scmp.eq.s32.totalorder %s12, 1
      %p78 = por %p76, %p77
      %p79 = scmp.ne.s32.totalorder %s71, %s74
      %p80 = scmp.eq.s32.totalorder %s12, 0
      %p81 = por %p79, %p80
      %p82 = scmp.ne.s32.totalorder %s71, %s74
      %p83 = scmp.eq.s32.totalorder %s17, 1
      %p84 = por %p82, %p83
      %p85 = scmp.ne.s32.totalorder %s74, %s75
      %p86 = scmp.eq.s32.totalorder %s17, 0
      %p87 = por %p85, %p86
      %p88 = scmp.ne.s32.totalorder %s74, %s75
      %p89 = scmp.eq.s32.totalorder %s18, 1
      %p90 = por %p88, %p89
      %p92 = scmp.ne.s32.totalorder %s75, %s91
      %p93 = scmp.eq.s32.totalorder %s18, 0
      %p94 = por %p92, %p93
      %s95 = ssub.s32 %s20, %s34
      %p96 = scmp.eq.s32.totalorder %s95, 0
      %s98 = sadd.s32 %s97, 1
      %s99 = scalar_select %p96, %s97, %s98
      %p102 = pneg %p96
      %p103 = scmp.eq.s32.totalorder %s12, 1
      %p104 = por %p102, %p103
      %p105 = scmp.ne.s32.totalorder %s97, %s100
      %p106 = scmp.eq.s32.totalorder %s12, 0
      %p107 = por %p105, %p106
      %p108 = scmp.ne.s32.totalorder %s97, %s100
      %p109 = scmp.eq.s32.totalorder %s17, 1
      %p110 = por %p108, %p109
      %p111 = scmp.ne.s32.totalorder %s100, %s101
      %p112 = scmp.eq.s32.totalorder %s17, 0
      %p113 = por %p111, %p112
      %p114 = scmp.ne.s32.totalorder %s100, %s101
      %p115 = scmp.eq.s32.totalorder %s18, 1
      %p116 = por %p114, %p115
      %p118 = scmp.ne.s32.totalorder %s101, %s117
      %p119 = scmp.eq.s32.totalorder %s18, 0
      %p120 = por %p118, %p119
      %s121 = ssub.s32 %s19, %s38
      %s122 = ssub.s32 %s20, %s34
      %s123 = sor.u32 %s121, %s122
      %s124 = ssub.s32 %s21, %s30
      %s125 = sor.u32 %s123, %s124
      %p126 = scmp.eq.s32.totalorder %s125, 0
      %s128 = sadd.s32 %s127, 1
      %s129 = scalar_select %p126, %s127, %s128
      %p132 = pneg %p126
      %p133 = scmp.eq.s32.totalorder %s12, 1
      %p134 = por %p132, %p133
      %p135 = scmp.ne.s32.totalorder %s127, %s130
      %p136 = scmp.eq.s32.totalorder %s12, 0
      %p137 = por %p135, %p136
      %p138 = scmp.ne.s32.totalorder %s127, %s130
      %p139 = scmp.eq.s32.totalorder %s17, 1
      %p140 = por %p138, %p139
      %p141 = scmp.ne.s32.totalorder %s130, %s131
      %p142 = scmp.eq.s32.totalorder %s17, 0
      %p143 = por %p141, %p142
      %p144 = scmp.ne.s32.totalorder %s130, %s131
      %p145 = scmp.eq.s32.totalorder %s18, 1
      %p146 = por %p144, %p145
      %p148 = scmp.ne.s32.totalorder %s131, %s147
      %p149 = scmp.eq.s32.totalorder %s18, 0
      %p150 = por %p148, %p149
      %p151 = scmp.le.s32.totalorder 1, %s12
      %p152 = scmp.lt.s32.totalorder %s12, 3
      %p153 = pnand %p151, %p152
      %p154 = pneg %p153
      // Predicated region
      $region9: #{tpu_custom_call.1} parent=5 // pred_check
        _
      $region10: #{tpu_custom_call.1} parent=5 // pred_check_branch
        %156 = sbr.rel (%p153) target = $region12
      $region11: #{tpu_custom_call.1} parent=5 // pred_region
        %s157 = ssub.s32 %s12, 1
        // Predicated region
        $region13: #{tpu_custom_call.1} parent=11 // pred_check
          %p158 = pneg %p87
        $region14: #{tpu_custom_call.1} parent=11 // pred_check_branch
          %160 = sbr.rel (%p158) target = $region16
        $region15: #{tpu_custom_call.1} parent=11 // pred_region
          %p161 = scmp.lt.s32.totalorder %s23, 0
          %s162 = scalar_select %p161, %s23, 0
          %s163 = smul.addr %s162, 4
          %s164 = scalar_lea.vmem %s1, %s163
        $region16: #{tpu_custom_call.1} parent=11 // pred_fallthru
          _
        // Predicated region
        $region17: #{tpu_custom_call.1} parent=11 // pred_check
          %p165 = pneg %p113
        $region18: #{tpu_custom_call.1} parent=11 // pred_check_branch
          %167 = sbr.rel (%p165) target = $region20
        $region19: #{tpu_custom_call.1} parent=11 // pred_region
          %p168 = scmp.lt.s32.totalorder %s23, 0
          %s169 = scalar_select %p168, %s23, 0
          %s170 = smul.addr %s169, 4
          %s171 = scalar_lea.vmem %s2, %s170
        $region20: #{tpu_custom_call.1} parent=11 // pred_fallthru
          _
      $region12: #{tpu_custom_call.1} parent=5 // pred_fallthru
        _
      %p172 = scmp.lt.s32.totalorder %s12, 2
      // Predicated region
      $region21: #{tpu_custom_call.1} parent=5 // pred_check
        %p173 = pneg %p172
      $region22: #{tpu_custom_call.1} parent=5 // pred_check_branch
        %175 = sbr.rel (%p173) target = $region24
      $region23: #{tpu_custom_call.1} parent=5 // pred_region
        // Predicated region
        $region25: #{tpu_custom_call.1} parent=23 // pred_check
          %p176 = pneg %p55
        $region26: #{tpu_custom_call.1} parent=23 // pred_check_branch
          %178 = sbr.rel (%p176) target = $region28
        $region27: #{tpu_custom_call.1} parent=23 // pred_region
          %p179 = scmp.lt.s32.totalorder %s19, 1
          %s180 = scalar_select %p179, %s19, 1
          %p181 = scmp.lt.s32.totalorder %s20, 0
          %s182 = scalar_select %p181, %s20, 0
          %p183 = scmp.lt.s32.totalorder %s21, 0
          %s184 = scalar_select %p183, %s21, 0
          %s185 = sadd.s32 %s184, %s182
          %s186 = sadd.s32 %s185, %s180
          %s187 = smul.addr %s186, 4
          %s188 = scalar_lea.vmem %s0, %s187
        $region28: #{tpu_custom_call.1} parent=23 // pred_fallthru
          _
      $region24: #{tpu_custom_call.1} parent=5 // pred_fallthru
        _
      %p189 = scmp.le.s32.totalorder 1, %s12
      %p190 = scmp.lt.s32.totalorder %s12, 3
      %p191 = pnand %p189, %p190
      %p192 = pneg %p191
      // Predicated region
      $region29: #{tpu_custom_call.1} parent=5 // pred_check
        _
      $region30: #{tpu_custom_call.1} parent=5 // pred_check_branch
        %194 = sbr.rel (%p191) target = $region32
      $region31: #{tpu_custom_call.1} parent=5 // pred_region
        %s195 = ssub.s32 %s12, 1
        %p196 = scmp.lt.s32.totalorder %s22, 1
        %s197 = scalar_select %p196, %s22, 1
        %p198 = scmp.lt.s32.totalorder %s23, 0
        %s199 = scalar_select %p198, %s23, 0
        %p200 = scmp.lt.s32.totalorder %s24, 0
        %s201 = scalar_select %p200, %s24, 0
        %s202 = sadd.s32 %s201, %s199
        %s203 = sadd.s32 %s202, %s197
        %s204 = smul.addr %s203, 4
        %s205 = scalar_lea.vmem %s0, %s204
        %p206 = pneg %p61
        %p207 = pneg %p58
        %p208 = scmp.lt.s32.totalorder %s23, 0
        %s209 = scalar_select %p208, %s23, 0
        %s210 = smul.addr %s209, 4
        %s211 = scalar_lea.vmem %s1, %s210
        %p212 = pneg %p87
        %p213 = pneg %p84
        %p214 = scmp.lt.s32.totalorder %s23, 0
        %s215 = scalar_select %p214, %s23, 0
        %s216 = smul.addr %s215, 4
        %s217 = scalar_lea.vmem %s2, %s216
        %p218 = pneg %p113
        %p219 = pneg %p110
        %p220 = pneg %p143
        %p221 = pneg %p140
        %s222 = sand.u32 %s130, 1
        %s223 = scalar_lea.sflag [#allocation3], %s222
        %s224 = sand.u32 %s130, 1
        %s225 = smul.addr %s224, 4
        %s226 = scalar_lea.vmem [#allocation2], %s225
        %p227 = scmp.lt.s32.totalorder %s22, 1
        %s228 = scalar_select %p227, %s22, 1
        %p229 = scmp.lt.s32.totalorder %s23, 0
        %s230 = scalar_select %p229, %s23, 0
        %p231 = scmp.lt.s32.totalorder %s24, 0
        %s232 = scalar_select %p231, %s24, 0
        %s233 = sadd.s32 %s232, %s230
        %s234 = sadd.s32 %s233, %s228
        %s235 = smul.addr %s234, 4
        %s236 = scalar_lea.vmem %s0, %s235
        %p237 = scmp.lt.s32.totalorder %s23, 0
        %s238 = scalar_select %p237, %s23, 0
        %s239 = smul.addr %s238, 4
        %s240 = scalar_lea.vmem %s1, %s239
        %p241 = scmp.lt.s32.totalorder %s23, 0
        %s242 = scalar_select %p241, %s23, 0
        %s243 = smul.addr %s242, 4
        %s244 = scalar_lea.vmem %s2, %s243
        %v245 = vld [vmem:[%s236] sm:$0xf]
        %v246 = vld [vmem:[%s240] sm:$0xf]
        %v247 = vld [vmem:[%s244] sm:$0xf]
        %249 = vset.pattern.permute.xlu0 0
        %250 = vperm.xlu0 %249, %v246
        %v251 = vpop.permute.xlu0 %250
        %v253 = vmul.f32 %v245, %v251
        %v254 = vand.u32 2147483647, %v253
        %vm255 = vcmp.le.f32.partialorder %v254, 0.7853982
        %vm256 = vcmp.lt.s32.totalorder %v253, 0
        %v257 = vand.u32 %v253, 2139095040
        %v258 = vshrl.u32 %v257, 23
        %v259 = vsub.s32 %v258, 127
        %v260 = vand.u32 2147483647, %v253
        %v261 = vand.u32 %v260, 8388607
        %v262 = vor.u32 %v261, 8388608
        %v263 = vsub.s32 0, %v262
        %v264 = vadd.s32 %v259, 1
        %vm265 = vcmp.gt.s32.totalorder %v264, 0
        %v266 = vsel %vm265, %v264, 0
        %v267 = vshrl.u32 %v266, 5
        %v268 = vand.u32 %v266, 31
        %v269 = vsub.s32 32, %v268
        %v270 = vshrl.u32 683565275, %v269
        %v271 = vshll.u32 683565275, %v268
        %v272 = vshrl.u32 2475754826, %v269
        %v273 = vor.u32 %v271, %v272
        %v274 = vshll.u32 2475754826, %v268
        %v275 = vshrl.u32 2131351028, %v269
        %v276 = vor.u32 %v274, %v275
        %v277 = vshll.u32 2131351028, %v268
        %v278 = vshrl.u32 2102212464, %v269
        %v279 = vor.u32 %v277, %v278
        %v280 = vshll.u32 2102212464, %v268
        %v281 = vshrl.u32 920167782, %v269
        %v282 = vor.u32 %v280, %v281
        %v283 = vshll.u32 920167782, %v268
        %v284 = vshrl.u32 1326507024, %v269
        %v285 = vor.u32 %v283, %v284
        %vm286 = vcmp.lt.s32.totalorder %v267, 1
        %vm287 = vcmp.lt.s32.totalorder %v267, 2
        %vm288 = vcmp.lt.s32.totalorder %v267, 3
        %vm289 = vcmp.lt.s32.totalorder %v267, 4
        %v290 = vsel %vm286, %v270, %v273
        %v291 = vsel %vm289, %v279, 2102212464
        %v292 = vsel %vm288, %v276, %v291
        %v293 = vsel %vm287, %v290, %v292
        %v294 = vsel %vm286, %v273, %v276
        %v295 = vsel %vm289, %v282, 920167782
        %v296 = vsel %vm288, %v279, %v295
        %v297 = vsel %vm287, %v294, %v296
        %v298 = vsel %vm286, %v276, %v279
        %v299 = vsel %vm289, %v285, 1326507024
        %v300 = vsel %vm288, %v282, %v299
        %v301 = vsel %vm287, %v298, %v300
        %v302 = vshll.u32 %v262, 8
        %v303 = vmul.u32.u64.compose %v302, %v301
        %v304 = vextract.low.u32 %v303
        %v305 = vextract.high.u32 %v303
        %v306 = vmul.u32.u64.compose %v302, %v297
        %v307 = vextract.low.u32 %v306
        %v308 = vextract.high.u32 %v306
        %v309 = vmul.u32 %v302, %v293
        %v310 = vadd.s32 %v305, %v307
        %vm311 = vc.u32 %v305, %v307
        %v312 = vadd.s32 %v308, 1
        %v313 = vsel %vm311, %v312, %v308
        %v314 = vadd.s32 %v309, %v313
        %v315 = vadd.s32 %v314, 536870912
        %v316 = vshrl.u32 %v315, 30
        %v317 = vshll.u32 %v316, 30
        %v318 = vsub.s32 %v314, %v317
        %vm319 = vcmp.lt.s32.totalorder %v318, 0
        %v320 = vsub.s32 0, %v318
        %v321 = vsel %vm319, %v320, %v318
        %v322 = vclz %v321
        %v323 = vsub.s32 %v322, 2
        %vm324 = vcmp.gt.s32.totalorder 0, %v323
        %v325 = vsel %vm324, 0, %v323
        %v326 = vsub.s32 32, %v325
        %v327 = vshll.u32 %v318, %v325
        %v328 = vshrl.u32 %v310, %v326
        %v329 = vor.u32 %v327, %v328
        %v330 = vsub.s32 4294967266, %v325
        %v331 = vadd.s32 %v330, 127
        %v332 = vshll.u32 %v331, 23
        %v333 = vor.u32 4788187, %v332
        %v334 = vand.u32 2147483647, %v333
        %v336 = vcvt.s32.f32 %v329
        %v337 = vmul.f32 %v336, %v334
        %v338 = vxor.u32 %v337, 2147483648
        %v339 = vsel %vm256, %v338, %v337
        %v340 = vsub.s32 4, %v316
        %v341 = vsel %vm256, %v340, %v316
        %v342 = vsel %vm255, %v253, %v339
        %v343 = vsel %vm255, 0, %v341
        %v344 = vcosq.f32.pop %v342
        %v345 = vsinq.f32.pop %v342
        %vm346 = vweird.f32 %v253
        %v347 = vadd.s32 %v343, 3
        %v348 = vand.u32 %v347, 3
        %vm349 = vcmp.lt.s32.totalorder %v348, 2
        %vm350 = vcmp.eq.s32.totalorder %v348, 0
        %v351 = vxor.u32 %v345, 2147483648
        %v352 = vsel %vm350, %v344, %v351
        %vm353 = vcmp.eq.s32.totalorder %v348, 2
        %v354 = vxor.u32 %v344, 2147483648
        %v355 = vsel %vm353, %v354, %v345
        %v356 = vsel %vm349, %v352, %v355
        %v357 = vsel %vm346, nan, %v356
        %v358 = vmul.f32 %v357, %v357
        %360 = vset.pattern.permute.xlu0 0
        %361 = vperm.xlu0 %360, %v247
        %v362 = vpop.permute.xlu0 %361
        %v364 = vmul.f32 %v362, %v358
        %v365 = vadd.f32 %v245, %v364
        %vm366 = vcmask 125952
        %367 = vst.msk [vmem:[%s226] sm:$0xf] %vm366, %v365
        %s368 = sand.u32 %s130, 1
        %s369 = scalar_lea.sflag [#allocation3], %s368
        %s370 = sand.u32 %s130, 1
        %s371 = smul.addr %s370, 4
        %s372 = scalar_lea.vmem [#allocation2], %s371
        // Predicated region
        $region33: #{tpu_custom_call.1} parent=31 // pred_check
          %p373 = pneg %p140
        $region34: #{tpu_custom_call.1} parent=31 // pred_check_branch
          %375 = sbr.rel (%p373) target = $region36
        $region35: #{tpu_custom_call.1} parent=31 // pred_region
          %s377 = ssub.s32 64, 64
          %378 = vsyncadd %s369, %s377
          %s379 = sadd.s32 %s24, %s23
          %s380 = sadd.s32 %s379, %s22
          %s381 = smul.addr %s380, 64
          %s382 = scalar_lea.hbm %s3, %s381
          %s384 = sshll.u32 %s372, 4
          %s385 = int_to_ptr.vmem [resolvable:$true] %s384
          %387 = dma.vmem_to_hbm [thread:$0]  %s385, 64, %s382, %s369
        $region36: #{tpu_custom_call.1} parent=31 // pred_fallthru
          _
      $region32: #{tpu_custom_call.1} parent=5 // pred_fallthru
        _
      %p388 = scmp.le.s32.totalorder 2, %s12
      // Predicated region
      $region37: #{tpu_custom_call.1} parent=5 // pred_check
        %p389 = pneg %p388
      $region38: #{tpu_custom_call.1} parent=5 // pred_check_branch
        %391 = sbr.rel (%p389) target = $region40
      $region39: #{tpu_custom_call.1} parent=5 // pred_region
        %s392 = ssub.s32 %s12, 2
        // Predicated region
        $region41: #{tpu_custom_call.1} parent=39 // pred_check
          %p393 = pneg %p146
        $region42: #{tpu_custom_call.1} parent=39 // pred_check_branch
          %395 = sbr.rel (%p393) target = $region44
        $region43: #{tpu_custom_call.1} parent=39 // pred_region
          %s396 = sand.u32 %s131, 1
          %s397 = scalar_lea.sflag [#allocation3], %s396
          %s398 = sand.u32 %s131, 1
          %s399 = smul.addr %s398, 4
          %s400 = scalar_lea.vmem [#allocation2], %s399
          %401 = dma.done %s397, 64
        $region44: #{tpu_custom_call.1} parent=39 // pred_fallthru
          _
      $region40: #{tpu_custom_call.1} parent=5 // pred_fallthru
        _
    $region6: #{tpu_custom_call.1} parent=1 // loop_footer
      %s16 = sadd.s32 1, %s12
    $region7: #{tpu_custom_call.1} parent=1 // loop_footer_branch
      %11 = sbr.rel target = $region3
    $region8: #{tpu_custom_call.1} parent=1 // loop_exit
      _
    %402 = vsyncpa [#allocation3], 1
    %s403 = scalar_lea.sflag [#allocation3], 1
    %404 = vsyncpa %s403, 1

</llo_original>
